<compile_context>
chip_gen: v7x
topology: tpu7x:2x2x1
jax: 0.10.0
libtpu: 0.0.40
codegen_flags: <defaults>
</compile_context>

<pallas_src>
import functools

import jax
import jax.numpy as jnp
from jax import lax
from jax.experimental import pallas as pl
from jax.experimental.pallas import tpu as pltpu


def _round_up(x: int, m: int) -> int:
    return ((x + m - 1) // m) * m


def _self_attention_kernel(
    x_q_ref,    # (Sq, E)   query-row tile of x
    x_kv_ref,   # (S,  E)   full-sequence x (for K/V)
    wq_ref,     # (E,  E)   Q in-projection, (in, out)
    wkv_ref,    # (E, 2E)   fused K|V in-projection, (in, out)
    bq_ref,     # (1,  E)
    bkv_ref,    # (1, 2E)
    wf_ref,     # (H, Dh, O_pad)  folded out_proj @ projection, split per head
    bf_ref,     # (1, O_pad)      folded bias
    out_ref,    # (Sq, O_pad)
    *,
    num_heads: int,
    head_dim: int,
    compute_dtype,
):
    E = num_heads * head_dim
    scale = 1.0 / (head_dim ** 0.5)
    cdt = compute_dtype

    x_q = x_q_ref[...]                 # (Sq, E), compute_dtype
    x_kv = x_kv_ref[...]               # (S,  E), compute_dtype

    # In-projections: MXU matmuls with f32 accumulation, f32 bias add.
    q = jnp.dot(x_q, wq_ref[...], preferred_element_type=jnp.float32) + bq_ref[...]
    kv = jnp.dot(x_kv, wkv_ref[...], preferred_element_type=jnp.float32) + bkv_ref[...]
    k = kv[:, :E]                      # (S, E)
    v = kv[:, E:]                      # (S, E)

    # Per-head attention, each head contracted directly into the folded output
    # projection (no concat, no separate out_proj matmul).
    acc = jnp.zeros(out_ref.shape, jnp.float32)        # (Sq, O_pad)
    for h in range(num_heads):                         # num_heads is small & static
        lo = h * head_dim
        hi = lo + head_dim
        qh = (q[:, lo:hi] * scale).astype(cdt)         # (Sq, Dh)
        kh = k[:, lo:hi].astype(cdt)                   # (S,  Dh)
        vh = v[:, lo:hi].astype(cdt)                   # (S,  Dh)

        # scores = qh @ kh^T without an explicit XLU transpose.
        s = lax.dot_general(qh, kh, (((1,), (1,)), ((), ())),
                            preferred_element_type=jnp.float32)     # (Sq, S)
        s = s - jnp.max(s, axis=-1, keepdims=True)
        p = jnp.exp(s)
        p = p * pl.reciprocal(jnp.sum(p, axis=-1, keepdims=True), approx=True)

        oh = jnp.dot(p.astype(cdt), vh,
                     preferred_element_type=jnp.float32)            # (Sq, Dh)
        acc = acc + jnp.dot(oh.astype(cdt), wf_ref[h],
                            preferred_element_type=jnp.float32)     # (Sq, O_pad)

    out_ref[...] = (acc + bf_ref[...]).astype(out_ref.dtype)


def _prepare_kernel_params(params, *, num_heads: int, compute_dtype):
    """Convert PyTorch-layout params into the fused/folded kernel layout."""
    in_w = params["in_proj_weight"]      # (3E, E)  (out, in)
    in_b = params["in_proj_bias"]        # (3E,)
    out_w = params["out_proj_weight"]    # (E, E)   (out, in)
    out_b = params["out_proj_bias"]      # (E,)
    pr_w = params["proj_weight"]         # (O, E)   (out, in)
    pr_b = params["proj_bias"]           # (O,)

    E = out_w.shape[0]
    O = pr_w.shape[0]
    Dh = E // num_heads

    wq = in_w[:E].T                                        # (E, E) (in, out)
    wk = in_w[E:2 * E].T
    wv = in_w[2 * E:].T
    bq = in_b[:E]
    bk = in_b[E:2 * E]
    bv = in_b[2 * E:]

    w_kv = jnp.concatenate([wk, wv], axis=1)               # (E, 2E)
    b_kv = jnp.concatenate([bk, bv])[None, :]              # (1, 2E)

    # Fold attention out_proj into the final Linear (exact algebraic fold, done in f32).
    w_f = out_w.T @ pr_w.T                                 # (E, O)
    b_f = out_b[None, :] @ pr_w.T + pr_b[None, :]          # (1, O)

    # Lane-dense output: pad O up to a multiple of 128 with zero columns.
    O_pad = _round_up(max(O, 1), 128)
    if O_pad != O:
        w_f = jnp.pad(w_f, ((0, 0), (0, O_pad - O)))
        b_f = jnp.pad(b_f, ((0, 0), (0, O_pad - O)))

    w_f_heads = w_f.reshape(num_heads, Dh, O_pad)          # rows grouped by head

    return {
        "w_q": wq.astype(compute_dtype),
        "w_kv": w_kv.astype(compute_dtype),
        "b_q": bq[None, :].astype(jnp.float32),
        "b_kv": b_kv.astype(jnp.float32),
        "w_f_heads": w_f_heads.astype(compute_dtype),
        "b_f": b_f.astype(jnp.float32),
        "O": O,
        "O_pad": O_pad,
    }


def self_attention_layer(x, params, *, num_heads: int, compute_dtype=None,
                         q_block: int = 256):
    """Pallas forward for SelfAttentionLayer. x: (B, S, E) or (B, E)."""
    squeezed_input = x.ndim == 2
    if squeezed_input:
        x = x[:, None, :]                                  # torch unsqueeze(1)

    B, S, E = x.shape
    if E % num_heads != 0:
        raise ValueError(f"embed_dim {E} must be divisible by num_heads {num_heads}")
    head_dim = E // num_heads

    if compute_dtype is None:
        compute_dtype = x.dtype
    compute_dtype = jnp.dtype(compute_dtype)

    kp = _prepare_kernel_params(params, num_heads=num_heads, compute_dtype=compute_dtype)
    O, O_pad = kp["O"], kp["O_pad"]

    # Query-row tiling: full S for modest sequences, otherwise 256-row blocks
    # (second "parallel" grid axis: megacore work + bounded (Sq, S) score tiles).
    q_blk = S if S <= q_block else q_block
    n_q = pl.cdiv(S, q_blk)

    x_c = x.astype(compute_dtype)

    kernel = functools.partial(
        _self_attention_kernel,
        num_heads=num_heads,
        head_dim=head_dim,
        compute_dtype=compute_dtype,
    )

    const2 = lambda b, qi: (0, 0)

    out = pl.pallas_call(
        kernel,
        out_shape=jax.ShapeDtypeStruct((B, S, O_pad), x.dtype),
        grid_spec=pltpu.PrefetchScalarGridSpec(
            num_scalar_prefetch=0,
            grid=(B, n_q),
            in_specs=[
                pl.BlockSpec((pl.Squeezed(), q_blk, E), lambda b, qi: (b, qi, 0)),  # x (Q rows)
                pl.BlockSpec((pl.Squeezed(), S, E), lambda b, qi: (b, 0, 0)),       # x (K/V)
                pl.BlockSpec((E, E), const2),                                        # w_q
                pl.BlockSpec((E, 2 * E), const2),                                    # w_kv
                pl.BlockSpec((1, E), const2),                                        # b_q
                pl.BlockSpec((1, 2 * E), const2),                                    # b_kv
                pl.BlockSpec((num_heads, head_dim, O_pad),
                             lambda b, qi: (0, 0, 0)),                               # w_f per head
                pl.BlockSpec((1, O_pad), const2),                                    # b_f
            ],
            out_specs=pl.BlockSpec((pl.Squeezed(), q_blk, O_pad),
                                   lambda b, qi: (b, qi, 0)),
        ),
        compiler_params=pltpu.CompilerParams(
            dimension_semantics=("parallel", "parallel"),
            vmem_limit_bytes=48 * 1024 * 1024,
        ),
    )(
        x_c, x_c,
        kp["w_q"], kp["w_kv"], kp["b_q"], kp["b_kv"],
        kp["w_f_heads"], kp["b_f"],
    )

    out = out[:, :, :O]                                    # drop lane padding
    if squeezed_input and out.shape[1] == 1:
        out = out[:, 0, :]                                 # torch squeeze(1)
    return out


def init_params(key, input_dim, output_dim):
    """PyTorch-layout parameters (nn.MultiheadAttention + nn.Linear)."""
    ks = jax.random.split(key, 6)
    E, O = input_dim, output_dim
    return {
        "in_proj_weight": jax.random.normal(ks[0], (3 * E, E), jnp.float32) * 0.05,
        "in_proj_bias": jax.random.normal(ks[1], (3 * E,), jnp.float32) * 0.05,
        "out_proj_weight": jax.random.normal(ks[2], (E, E), jnp.float32) * 0.05,
        "out_proj_bias": jax.random.normal(ks[3], (E,), jnp.float32) * 0.05,
        "proj_weight": jax.random.normal(ks[4], (O, E), jnp.float32) * 0.05,
        "proj_bias": jax.random.normal(ks[5], (O,), jnp.float32) * 0.05,
    }


def _reference(x, params, num_heads):
    """Pure-JAX replication of nn.MultiheadAttention + nn.Linear forward."""
    B, S, E = x.shape
    Dh = E // num_heads
    in_w, in_b = params["in_proj_weight"], params["in_proj_bias"]
    q = x @ in_w[:E].T + in_b[:E]
    k = x @ in_w[E:2 * E].T + in_b[E:2 * E]
    v = x @ in_w[2 * E:].T + in_b[2 * E:]

    def split(t):                     # (B, S, E) -> (B, H, S, Dh)
        return t.reshape(B, S, num_heads, Dh).transpose(0, 2, 1, 3)

    qh, kh, vh = split(q), split(k), split(v)
    scores = jnp.einsum("bhqd,bhkd->bhqk", qh, kh) / (Dh ** 0.5)
    p = jax.nn.softmax(scores, axis=-1)
    o = jnp.einsum("bhqk,bhkd->bhqd", p, vh).transpose(0, 2, 1, 3).reshape(B, S, E)
    o = o @ params["out_proj_weight"].T + params["out_proj_bias"]
    return o @ params["proj_weight"].T + params["proj_bias"]


if __name__ == "__main__":
    B, S = 2, 8
    input_dim, output_dim, num_heads = 32, 16, 2

    key = jax.random.PRNGKey(0)
    kx, kp = jax.random.split(key)
    x = jax.random.normal(kx, (B, S, input_dim), jnp.float32)
    params = init_params(kp, input_dim, output_dim)

    ref = _reference(x, params, num_heads)

    # f32 compute path (tight tolerance; only difference vs reference is the
    # algebraic fold of out_proj into the final Linear).
    out = self_attention_layer(x, params, num_heads=num_heads,
                               compute_dtype=jnp.float32)
    out = jax.block_until_ready(out)
    assert out.shape == (B, S, output_dim), out.shape
    assert jnp.allclose(out, ref, atol=2e-3, rtol=2e-3), \
        float(jnp.max(jnp.abs(out - ref)))

    # bf16 compute path (2x MXU throughput; f32 accumulation) -- loose tolerance.
    out_bf16 = self_attention_layer(x, params, num_heads=num_heads,
                                    compute_dtype=jnp.bfloat16)
    out_bf16 = jax.block_until_ready(out_bf16)
    assert jnp.allclose(out_bf16, ref, atol=5e-2, rtol=5e-2), \
        float(jnp.max(jnp.abs(out_bf16 - ref)))

    # 2-D input path: (B, E) -> unsqueeze/attend/squeeze, like the torch module.
    x2 = jax.random.normal(jax.random.PRNGKey(1), (B, input_dim), jnp.float32)
    out2 = jax.block_until_ready(
        self_attention_layer(x2, params, num_heads=num_heads,
                             compute_dtype=jnp.float32))
    ref2 = _reference(x2[:, None, :], params, num_heads)[:, 0, :]
    assert out2.shape == (B, output_dim), out2.shape
    assert jnp.allclose(out2, ref2, atol=2e-3, rtol=2e-3), \
        float(jnp.max(jnp.abs(out2 - ref2)))

    print("KERNEL_OK")
</pallas_src>

<mosaic_0001>
module attributes {stable_mosaic.version = 11 : i64} {
  func.func @_self_attention_kernel(%arg0: i32, %arg1: i32, %arg2: memref<1x8x32xf32, #tpu.memory_space<vmem>>, %arg3: memref<1x8x32xf32, #tpu.memory_space<vmem>>, %arg4: memref<32x32xf32, #tpu.memory_space<vmem>>, %arg5: memref<32x64xf32, #tpu.memory_space<vmem>>, %arg6: memref<1x32xf32, #tpu.memory_space<vmem>>, %arg7: memref<1x64xf32, #tpu.memory_space<vmem>>, %arg8: memref<2x16x128xf32, #tpu.memory_space<vmem>>, %arg9: memref<1x128xf32, #tpu.memory_space<vmem>>, %arg10: memref<1x8x128xf32, #tpu.memory_space<vmem>>) attributes {dimension_semantics = [#tpu.dimension_semantics<parallel>, #tpu.dimension_semantics<parallel>], iteration_bounds = array<i64: 2, 1>, scalar_prefetch = 0 : i64, scratch_operands = 0 : i64, tpu.core_type = #tpu.core_type<tc>, window_params = [{transform_indices = @transform_0, window_bounds = array<i64: 1, 8, 32>}, {transform_indices = @transform_1, window_bounds = array<i64: 1, 8, 32>}, {pipeline_mode = #tpu.pipeline_mode<synchronous>, transform_indices = @transform_2, window_bounds = array<i64: 32, 32>}, {pipeline_mode = #tpu.pipeline_mode<synchronous>, transform_indices = @transform_3, window_bounds = array<i64: 32, 64>}, {pipeline_mode = #tpu.pipeline_mode<synchronous>, transform_indices = @transform_4, window_bounds = array<i64: 1, 32>}, {pipeline_mode = #tpu.pipeline_mode<synchronous>, transform_indices = @transform_5, window_bounds = array<i64: 1, 64>}, {pipeline_mode = #tpu.pipeline_mode<synchronous>, transform_indices = @transform_6, window_bounds = array<i64: 2, 16, 128>}, {pipeline_mode = #tpu.pipeline_mode<synchronous>, transform_indices = @transform_7, window_bounds = array<i64: 1, 128>}, {transform_indices = @transform_8, window_bounds = array<i64: 1, 8, 128>}]} {
    %c0 = arith.constant 0 : index
    %c0_0 = arith.constant 0 : index
    %c0_1 = arith.constant 0 : index
    %0 = vector.load %arg2[%c0, %c0_0, %c0_1] : memref<1x8x32xf32, #tpu.memory_space<vmem>>, vector<1x8x32xf32>
    %1 = vector.shape_cast %0 : vector<1x8x32xf32> to vector<8x32xf32>
    %c0_2 = arith.constant 0 : index
    %c0_3 = arith.constant 0 : index
    %c0_4 = arith.constant 0 : index
    %2 = vector.load %arg3[%c0_2, %c0_3, %c0_4] : memref<1x8x32xf32, #tpu.memory_space<vmem>>, vector<1x8x32xf32>
    %3 = vector.shape_cast %2 : vector<1x8x32xf32> to vector<8x32xf32>
    %c0_5 = arith.constant 0 : index
    %c0_6 = arith.constant 0 : index
    %4 = vector.load %arg4[%c0_5, %c0_6] : memref<32x32xf32, #tpu.memory_space<vmem>>, vector<32x32xf32>
    %cst = arith.constant dense<0.000000e+00> : vector<8x32xf32>
    %5 = tpu.matmul %1, %4, %cst {dimension_numbers = #tpu.dot_dimension_numbers<[1], [0], [0], [1], [0, 0, 1, 1], [], []>} : vector<8x32xf32>, vector<32x32xf32>, vector<8x32xf32> -> vector<8x32xf32>
    %c0_7 = arith.constant 0 : index
    %c0_8 = arith.constant 0 : index
    %6 = vector.load %arg6[%c0_7, %c0_8] : memref<1x32xf32, #tpu.memory_space<vmem>>, vector<1x32xf32>
    %7 = vector.broadcast %6 : vector<1x32xf32> to vector<8x32xf32>
    %8 = arith.addf %5, %7 : vector<8x32xf32>
    %c0_9 = arith.constant 0 : index
    %c0_10 = arith.constant 0 : index
    %9 = vector.load %arg5[%c0_9, %c0_10] : memref<32x64xf32, #tpu.memory_space<vmem>>, vector<32x64xf32>
    %cst_11 = arith.constant dense<0.000000e+00> : vector<8x64xf32>
    %10 = tpu.matmul %3, %9, %cst_11 {dimension_numbers = #tpu.dot_dimension_numbers<[1], [0], [0], [1], [0, 0, 1, 1], [], []>} : vector<8x32xf32>, vector<32x64xf32>, vector<8x64xf32> -> vector<8x64xf32>
    %c0_12 = arith.constant 0 : index
    %c0_13 = arith.constant 0 : index
    %11 = vector.load %arg7[%c0_12, %c0_13] : memref<1x64xf32, #tpu.memory_space<vmem>>, vector<1x64xf32>
    %12 = vector.broadcast %11 : vector<1x64xf32> to vector<8x64xf32>
    %13 = arith.addf %10, %12 : vector<8x64xf32>
    %14 = vector.extract_strided_slice %13 {offsets = [0, 0], sizes = [8, 32], strides = [1, 1]} : vector<8x64xf32> to vector<8x32xf32>
    %15 = vector.extract_strided_slice %13 {offsets = [0, 32], sizes = [8, 32], strides = [1, 1]} : vector<8x64xf32> to vector<8x32xf32>
    %cst_14 = arith.constant 0.000000e+00 : f32
    %16 = vector.broadcast %cst_14 : f32 to vector<8x128xf32>
    %17 = vector.extract_strided_slice %8 {offsets = [0, 0], sizes = [8, 16], strides = [1, 1]} : vector<8x32xf32> to vector<8x16xf32>
    %cst_15 = arith.constant 2.500000e-01 : f32
    %18 = vector.broadcast %cst_15 : f32 to vector<8x16xf32>
    %19 = arith.mulf %17, %18 : vector<8x16xf32>
    %20 = vector.extract_strided_slice %14 {offsets = [0, 0], sizes = [8, 16], strides = [1, 1]} : vector<8x32xf32> to vector<8x16xf32>
    %21 = vector.extract_strided_slice %15 {offsets = [0, 0], sizes = [8, 16], strides = [1, 1]} : vector<8x32xf32> to vector<8x16xf32>
    %cst_16 = arith.constant dense<0.000000e+00> : vector<8x8xf32>
    %22 = tpu.matmul %19, %20, %cst_16 {dimension_numbers = #tpu.dot_dimension_numbers<[1], [1], [0], [0], [0, 0, 1, 0], [], []>} : vector<8x16xf32>, vector<8x16xf32>, vector<8x8xf32> -> vector<8x8xf32>
    %cst_17 = arith.constant dense<0xFF800000> : vector<8xf32>
    %23 = vector.multi_reduction <maximumf>, %22, %cst_17 [1] : vector<8x8xf32> to vector<8xf32>
    %24 = vector.shape_cast %23 : vector<8xf32> to vector<8x1xf32>
    %25 = vector.broadcast %24 : vector<8x1xf32> to vector<8x8xf32>
    %26 = arith.subf %22, %25 : vector<8x8xf32>
    %27 = math.exp %26 : vector<8x8xf32>
    %cst_18 = arith.constant dense<0.000000e+00> : vector<8xf32>
    %28 = vector.multi_reduction <add>, %27, %cst_18 [1] : vector<8x8xf32> to vector<8xf32>
    %29 = vector.shape_cast %28 : vector<8xf32> to vector<8x1xf32>
    %30 = tpu.reciprocal %29 {approx = true} : vector<8x1xf32> -> vector<8x1xf32>
    %31 = vector.broadcast %30 : vector<8x1xf32> to vector<8x8xf32>
    %32 = arith.mulf %27, %31 : vector<8x8xf32>
    %cst_19 = arith.constant dense<0.000000e+00> : vector<8x16xf32>
    %33 = tpu.matmul %32, %21, %cst_19 {dimension_numbers = #tpu.dot_dimension_numbers<[1], [0], [0], [1], [0, 0, 1, 1], [], []>} : vector<8x8xf32>, vector<8x16xf32>, vector<8x16xf32> -> vector<8x16xf32>
    %c0_20 = arith.constant 0 : index
    %c0_21 = arith.constant 0 : index
    %c0_22 = arith.constant 0 : index
    %34 = vector.load %arg8[%c0_20, %c0_21, %c0_22] : memref<2x16x128xf32, #tpu.memory_space<vmem>>, vector<1x16x128xf32>
    %35 = vector.shape_cast %34 : vector<1x16x128xf32> to vector<16x128xf32>
    %cst_23 = arith.constant dense<0.000000e+00> : vector<8x128xf32>
    %36 = tpu.matmul %33, %35, %cst_23 {dimension_numbers = #tpu.dot_dimension_numbers<[1], [0], [0], [1], [0, 0, 1, 1], [], []>} : vector<8x16xf32>, vector<16x128xf32>, vector<8x128xf32> -> vector<8x128xf32>
    %37 = arith.addf %16, %36 : vector<8x128xf32>
    %38 = vector.extract_strided_slice %8 {offsets = [0, 16], sizes = [8, 16], strides = [1, 1]} : vector<8x32xf32> to vector<8x16xf32>
    %cst_24 = arith.constant 2.500000e-01 : f32
    %39 = vector.broadcast %cst_24 : f32 to vector<8x16xf32>
    %40 = arith.mulf %38, %39 : vector<8x16xf32>
    %41 = vector.extract_strided_slice %14 {offsets = [0, 16], sizes = [8, 16], strides = [1, 1]} : vector<8x32xf32> to vector<8x16xf32>
    %42 = vector.extract_strided_slice %15 {offsets = [0, 16], sizes = [8, 16], strides = [1, 1]} : vector<8x32xf32> to vector<8x16xf32>
    %cst_25 = arith.constant dense<0.000000e+00> : vector<8x8xf32>
    %43 = tpu.matmul %40, %41, %cst_25 {dimension_numbers = #tpu.dot_dimension_numbers<[1], [1], [0], [0], [0, 0, 1, 0], [], []>} : vector<8x16xf32>, vector<8x16xf32>, vector<8x8xf32> -> vector<8x8xf32>
    %cst_26 = arith.constant dense<0xFF800000> : vector<8xf32>
    %44 = vector.multi_reduction <maximumf>, %43, %cst_26 [1] : vector<8x8xf32> to vector<8xf32>
    %45 = vector.shape_cast %44 : vector<8xf32> to vector<8x1xf32>
    %46 = vector.broadcast %45 : vector<8x1xf32> to vector<8x8xf32>
    %47 = arith.subf %43, %46 : vector<8x8xf32>
    %48 = math.exp %47 : vector<8x8xf32>
    %cst_27 = arith.constant dense<0.000000e+00> : vector<8xf32>
    %49 = vector.multi_reduction <add>, %48, %cst_27 [1] : vector<8x8xf32> to vector<8xf32>
    %50 = vector.shape_cast %49 : vector<8xf32> to vector<8x1xf32>
    %51 = tpu.reciprocal %50 {approx = true} : vector<8x1xf32> -> vector<8x1xf32>
    %52 = vector.broadcast %51 : vector<8x1xf32> to vector<8x8xf32>
    %53 = arith.mulf %48, %52 : vector<8x8xf32>
    %cst_28 = arith.constant dense<0.000000e+00> : vector<8x16xf32>
    %54 = tpu.matmul %53, %42, %cst_28 {dimension_numbers = #tpu.dot_dimension_numbers<[1], [0], [0], [1], [0, 0, 1, 1], [], []>} : vector<8x8xf32>, vector<8x16xf32>, vector<8x16xf32> -> vector<8x16xf32>
    %c1 = arith.constant 1 : index
    %c0_29 = arith.constant 0 : index
    %c0_30 = arith.constant 0 : index
    %55 = vector.load %arg8[%c1, %c0_29, %c0_30] : memref<2x16x128xf32, #tpu.memory_space<vmem>>, vector<1x16x128xf32>
    %56 = vector.shape_cast %55 : vector<1x16x128xf32> to vector<16x128xf32>
    %cst_31 = arith.constant dense<0.000000e+00> : vector<8x128xf32>
    %57 = tpu.matmul %54, %56, %cst_31 {dimension_numbers = #tpu.dot_dimension_numbers<[1], [0], [0], [1], [0, 0, 1, 1], [], []>} : vector<8x16xf32>, vector<16x128xf32>, vector<8x128xf32> -> vector<8x128xf32>
    %58 = arith.addf %37, %57 : vector<8x128xf32>
    %c0_32 = arith.constant 0 : index
    %c0_33 = arith.constant 0 : index
    %59 = vector.load %arg9[%c0_32, %c0_33] : memref<1x128xf32, #tpu.memory_space<vmem>>, vector<1x128xf32>
    %60 = vector.broadcast %59 : vector<1x128xf32> to vector<8x128xf32>
    %61 = arith.addf %58, %60 : vector<8x128xf32>
    %c0_34 = arith.constant 0 : index
    %c0_35 = arith.constant 0 : index
    %c0_36 = arith.constant 0 : index
    %62 = vector.load %arg10[%c0_34, %c0_35, %c0_36] : memref<1x8x128xf32, #tpu.memory_space<vmem>>, vector<1x8x128xf32>
    %63 = vector.shape_cast %62 : vector<1x8x128xf32> to vector<8x128xf32>
    %64 = vector.shape_cast %61 : vector<8x128xf32> to vector<1x8x128xf32>
    tpu.vector_store %arg10[%c0_34, %c0_35, %c0_36], %64 {strides = array<i32>} : memref<1x8x128xf32, #tpu.memory_space<vmem>>, vector<1x8x128xf32>,
    return
  }
  func.func @transform_0(%arg0: i32, %arg1: i32) -> (i32, i32, i32) {
    %c0_i32 = arith.constant 0 : i32
    %c0_i32_0 = arith.constant 0 : i32
    return %arg0, %arg1, %c0_i32 : i32, i32, i32
  }
  func.func @transform_1(%arg0: i32, %arg1: i32) -> (i32, i32, i32) {
    %c0_i32 = arith.constant 0 : i32
    %c0_i32_0 = arith.constant 0 : i32
    %c0_i32_1 = arith.constant 0 : i32
    return %arg0, %c0_i32, %c0_i32_0 : i32, i32, i32
  }
  func.func @transform_2(%arg0: i32, %arg1: i32) -> (i32, i32) {
    %c0_i32 = arith.constant 0 : i32
    %c0_i32_0 = arith.constant 0 : i32
    %c0_i32_1 = arith.constant 0 : i32
    return %c0_i32, %c0_i32_0 : i32, i32
  }
  func.func @transform_3(%arg0: i32, %arg1: i32) -> (i32, i32) {
    %c0_i32 = arith.constant 0 : i32
    %c0_i32_0 = arith.constant 0 : i32
    %c0_i32_1 = arith.constant 0 : i32
    return %c0_i32, %c0_i32_0 : i32, i32
  }
  func.func @transform_4(%arg0: i32, %arg1: i32) -> (i32, i32) {
    %c0_i32 = arith.constant 0 : i32
    %c0_i32_0 = arith.constant 0 : i32
    %c0_i32_1 = arith.constant 0 : i32
    return %c0_i32, %c0_i32_0 : i32, i32
  }
  func.func @transform_5(%arg0: i32, %arg1: i32) -> (i32, i32) {
    %c0_i32 = arith.constant 0 : i32
    %c0_i32_0 = arith.constant 0 : i32
    %c0_i32_1 = arith.constant 0 : i32
    return %c0_i32, %c0_i32_0 : i32, i32
  }
  func.func @transform_6(%arg0: i32, %arg1: i32) -> (i32, i32, i32) {
    %c0_i32 = arith.constant 0 : i32
    %c0_i32_0 = arith.constant 0 : i32
    %c0_i32_1 = arith.constant 0 : i32
    %c0_i32_2 = arith.constant 0 : i32
    return %c0_i32, %c0_i32_0, %c0_i32_1 : i32, i32, i32
  }
  func.func @transform_7(%arg0: i32, %arg1: i32) -> (i32, i32) {
    %c0_i32 = arith.constant 0 : i32
    %c0_i32_0 = arith.constant 0 : i32
    %c0_i32_1 = arith.constant 0 : i32
    return %c0_i32, %c0_i32_0 : i32, i32
  }
  func.func @transform_8(%arg0: i32, %arg1: i32) -> (i32, i32, i32) {
    %c0_i32 = arith.constant 0 : i32
    %c0_i32_0 = arith.constant 0 : i32
    return %arg0, %arg1, %c0_i32 : i32, i32, i32
  }
}

</mosaic_0001>

<llo_original>
// kernel: tpu_custom_call.1
$region0: #{tpu_custom_call.1}
  #allocation0 [shape = 'u32[]', space=smem, size = 0x4, offset = 0x4, fixed_abs, tag = 'smem constant byte address 0x4 - core index']
  #allocation1 [shape = 'u32[144,128]{1,0:T(1,128)}', space=vmem, size = 0x12000, scoped, tag = 'internal scratch']
  %s0 = inlined_call_operand.hbm [shape: f32[2,8,32], index: 0, kind: input, shape index: {}]
  %s1 = inlined_call_operand.hbm [shape: f32[2,8,32], index: 1, kind: input, shape index: {}]
  %s2 = inlined_call_operand.hbm [shape: f32[32,32], index: 2, kind: input, shape index: {}]
  %s3 = inlined_call_operand.hbm [shape: f32[32,64], index: 3, kind: input, shape index: {}]
  %s4 = inlined_call_operand.vmem [shape: f32[1,32], index: 4, kind: input, shape index: {}]
  %s5 = inlined_call_operand.vmem [shape: f32[1,64], index: 5, kind: input, shape index: {}]
  %s6 = inlined_call_operand.hbm [shape: f32[2,16,128], index: 6, kind: input, shape index: {}]
  %s7 = inlined_call_operand.vmem [shape: f32[1,128], index: 7, kind: input, shape index: {}]
  %s8 = inlined_call_operand.hbm [shape: f32[2,8,128], index: 8, kind: output, shape index: {}]
  %s9 = sld [smem:[#allocation0]]
  $region85: #{tpu_custom_call.1} parent=0
    _
  %s11 = ssub.s32 1, %s9
  %s12 = scalar_select 0, %s11, %s9
  $region1: #{tpu_custom_call.1} parent=0
    #allocation2 [shape = 'u8[8192]{0}', space=vmem, size = 0x2000, scoped, tag = 'input window, operand 0']
    #allocation3 [shape = 's32[2]{0}', space=sflag, size = 0x8, scoped, tag = 'scoped memory for tpu_custom_call.1']
    #allocation4 [shape = 's32[2]{0}', space=sflag, size = 0x8, scoped, tag = 'scoped memory for tpu_custom_call.1']
    #allocation5 [shape = 'u8[8192]{0}', space=vmem, size = 0x2000, scoped, tag = 'input window, operand 1']
    #allocation6 [shape = 's32[2]{0}', space=sflag, size = 0x8, scoped, tag = 'scoped memory for tpu_custom_call.1']
    #allocation7 [shape = 'u8[16384]{0}', space=vmem, size = 0x4000, scoped, tag = 'input window, operand 2, single buffered']
    #allocation8 [shape = 'u8[16384]{0}', space=vmem, size = 0x4000, scoped, tag = 'input window, operand 3, single buffered']
    #allocation9 [shape = 's32[1]{0}', space=sflag, size = 0x4, scoped, tag = 'scoped memory for tpu_custom_call.1']
    #allocation10 [shape = 'u8[16384]{0}', space=vmem, size = 0x4000, scoped, tag = 'input window, operand 6, single buffered']
    #allocation11 [shape = 'u8[8192]{0}', space=vmem, size = 0x2000, scoped, tag = 'output window, operand 0']
    %13 = vsyncpa [#allocation3], 0
    %s14 = scalar_lea.sflag [#allocation3], 1
    %15 = vsyncpa %s14, 0
    %16 = vsyncpa [#allocation6], 0
    %s17 = scalar_lea.sflag [#allocation6], 1
    %18 = vsyncpa %s17, 0
    %19 = vsyncpa [#allocation9], 0
    %20 = vsyncpa [#allocation4], 0
    %s21 = scalar_lea.sflag [#allocation4], 1
    %22 = vsyncpa %s21, 0
    loop: start=0, step=1, limit=4
    $region2: #{tpu_custom_call.1} parent=1 // loop_pre_header
      _
    $region3: #{tpu_custom_call.1} parent=1 // loop_header
      %s24 = sphi 0, %s28
      %p25 = scmp.ge.s32.totalorder %s24, 4
      %s31 = sphi 0, %s43
      %s32 = sphi 0, %s39
      %s33 = sphi 0, %s31
      %s34 = sphi 0, %s32
      %s35 = sphi 0, %s33
      %s36 = sphi 0, %s34
      %s48 = sphi 0, %s50
      %s51 = sphi 0, %s48
      %s52 = sphi 0, %s51
      %s68 = sphi 0, %s52
      %s74 = sphi 0, %s76
      %s77 = sphi 0, %s74
      %s78 = sphi 0, %s77
      %s94 = sphi 0, %s78
      %s98 = sphi 0, %s98
      %s100 = sphi 0, %s98
      %s101 = sphi 0, %s100
      %s115 = sphi 0, %s101
      %s119 = sphi 0, %s119
      %s121 = sphi 0, %s119
      %s122 = sphi 0, %s121
      %s136 = sphi 0, %s122
      %s140 = sphi 0, %s140
      %s142 = sphi 0, %s140
      %s143 = sphi 0, %s142
      %s157 = sphi 0, %s143
      %s161 = sphi 0, %s161
      %s163 = sphi 0, %s161
      %s164 = sphi 0, %s163
      %s178 = sphi 0, %s164
      %s182 = sphi 0, %s182
      %s184 = sphi 0, %s182
      %s185 = sphi 0, %s184
      %s199 = sphi 0, %s185
      %s203 = sphi 0, %s203
      %s205 = sphi 0, %s203
      %s206 = sphi 0, %s205
      %s220 = sphi 0, %s206
      %s228 = sphi 0, %s230
      %s231 = sphi 0, %s228
      %s232 = sphi 0, %s231
      %s248 = sphi 0, %s232
    $region4: #{tpu_custom_call.1} parent=1 // loop_header_branch
      %27 = sbr.rel (%p25) target = $region8
    $region5: #{tpu_custom_call.1} parent=1 // loop_body
      %s29 = ssub.s32 %s24, 1
      %s30 = ssub.s32 %s24, 2
      %s37 = sadd.s32 1, %s32
      %p38 = scmp.ge.s32.totalorder %s37, 1
      %s39 = scalar_select %p38, 0, %s37
      %s40 = sadd.s32 1, %s31
      %s41 = scalar_select %p38, %s40, %s31
      %p42 = scmp.ge.s32.totalorder %s41, 2
      %s43 = scalar_select %p42, 0, %s41
      %s44 = ssub.s32 %s31, %s43
      %s45 = ssub.s32 %s32, %s39
      %s46 = sor.u32 %s44, %s45
      %p47 = scmp.eq.s32.totalorder %s46, 0
      %s49 = sadd.s32 %s48, 1
      %s50 = scalar_select %p47, %s48, %s49
      %p53 = pneg %p47
      %p54 = scmp.eq.s32.totalorder %s24, 1
      %p55 = por %p53, %p54
      %p56 = scmp.ne.s32.totalorder %s48, %s51
      %p57 = scmp.eq.s32.totalorder %s24, 0
      %p58 = por %p56, %p57
      %p59 = scmp.ne.s32.totalorder %s48, %s51
      %p60 = scmp.eq.s32.totalorder %s29, 1
      %p61 = por %p59, %p60
      %p62 = scmp.ne.s32.totalorder %s51, %s52
      %p63 = scmp.eq.s32.totalorder %s29, 0
      %p64 = por %p62, %p63
      %p65 = scmp.ne.s32.totalorder %s51, %s52
      %p66 = scmp.eq.s32.totalorder %s30, 1
      %p67 = por %p65, %p66
      %p69 = scmp.ne.s32.totalorder %s52, %s68
      %p70 = scmp.eq.s32.totalorder %s30, 0
      %p71 = por %p69, %p70
      %s72 = ssub.s32 %s31, %s43
      %p73 = scmp.eq.s32.totalorder %s72, 0
      %s75 = sadd.s32 %s74, 1
      %s76 = scalar_select %p73, %s74, %s75
      %p79 = pneg %p73
      %p80 = scmp.eq.s32.totalorder %s24, 1
      %p81 = por %p79, %p80
      %p82 = scmp.ne.s32.totalorder %s74, %s77
      %p83 = scmp.eq.s32.totalorder %s24, 0
      %p84 = por %p82, %p83
      %p85 = scmp.ne.s32.totalorder %s74, %s77
      %p86 = scmp.eq.s32.totalorder %s29, 1
      %p87 = por %p85, %p86
      %p88 = scmp.ne.s32.totalorder %s77, %s78
      %p89 = scmp.eq.s32.totalorder %s29, 0
      %p90 = por %p88, %p89
      %p91 = scmp.ne.s32.totalorder %s77, %s78
      %p92 = scmp.eq.s32.totalorder %s30, 1
      %p93 = por %p91, %p92
      %p95 = scmp.ne.s32.totalorder %s78, %s94
      %p96 = scmp.eq.s32.totalorder %s30, 0
      %p97 = por %p95, %p96
      %s99 = sadd.s32 %s98, 1
      %p102 = scmp.eq.s32.totalorder %s24, 1
      %p103 = scmp.ne.s32.totalorder %s98, %s100
      %p104 = scmp.eq.s32.totalorder %s24, 0
      %p105 = por %p103, %p104
      %p106 = scmp.ne.s32.totalorder %s98, %s100
      %p107 = scmp.eq.s32.totalorder %s29, 1
      %p108 = por %p106, %p107
      %p109 = scmp.ne.s32.totalorder %s100, %s101
      %p110 = scmp.eq.s32.totalorder %s29, 0
      %p111 = por %p109, %p110
      %p112 = scmp.ne.s32.totalorder %s100, %s101
      %p113 = scmp.eq.s32.totalorder %s30, 1
      %p114 = por %p112, %p113
      %p116 = scmp.ne.s32.totalorder %s101, %s115
      %p117 = scmp.eq.s32.totalorder %s30, 0
      %p118 = por %p116, %p117
      %s120 = sadd.s32 %s119, 1
      %p123 = scmp.eq.s32.totalorder %s24, 1
      %p124 = scmp.ne.s32.totalorder %s119, %s121
      %p125 = scmp.eq.s32.totalorder %s24, 0
      %p126 = por %p124, %p125
      %p127 = scmp.ne.s32.totalorder %s119, %s121
      %p128 = scmp.eq.s32.totalorder %s29, 1
      %p129 = por %p127, %p128
      %p130 = scmp.ne.s32.totalorder %s121, %s122
      %p131 = scmp.eq.s32.totalorder %s29, 0
      %p132 = por %p130, %p131
      %p133 = scmp.ne.s32.totalorder %s121, %s122
      %p134 = scmp.eq.s32.totalorder %s30, 1
      %p135 = por %p133, %p134
      %p137 = scmp.ne.s32.totalorder %s122, %s136
      %p138 = scmp.eq.s32.totalorder %s30, 0
      %p139 = por %p137, %p138
      %s141 = sadd.s32 %s140, 1
      %p144 = scmp.eq.s32.totalorder %s24, 1
      %p145 = scmp.ne.s32.totalorder %s140, %s142
      %p146 = scmp.eq.s32.totalorder %s24, 0
      %p147 = por %p145, %p146
      %p148 = scmp.ne.s32.totalorder %s140, %s142
      %p149 = scmp.eq.s32.totalorder %s29, 1
      %p150 = por %p148, %p149
      %p151 = scmp.ne.s32.totalorder %s142, %s143
      %p152 = scmp.eq.s32.totalorder %s29, 0
      %p153 = por %p151, %p152
      %p154 = scmp.ne.s32.totalorder %s142, %s143
      %p155 = scmp.eq.s32.totalorder %s30, 1
      %p156 = por %p154, %p155
      %p158 = scmp.ne.s32.totalorder %s143, %s157
      %p159 = scmp.eq.s32.totalorder %s30, 0
      %p160 = por %p158, %p159
      %s162 = sadd.s32 %s161, 1
      %p165 = scmp.eq.s32.totalorder %s24, 1
      %p166 = scmp.ne.s32.totalorder %s161, %s163
      %p167 = scmp.eq.s32.totalorder %s24, 0
      %p168 = por %p166, %p167
      %p169 = scmp.ne.s32.totalorder %s161, %s163
      %p170 = scmp.eq.s32.totalorder %s29, 1
      %p171 = por %p169, %p170
      %p172 = scmp.ne.s32.totalorder %s163, %s164
      %p173 = scmp.eq.s32.totalorder %s29, 0
      %p174 = por %p172, %p173
      %p175 = scmp.ne.s32.totalorder %s163, %s164
      %p176 = scmp.eq.s32.totalorder %s30, 1
      %p177 = por %p175, %p176
      %p179 = scmp.ne.s32.totalorder %s164, %s178
      %p180 = scmp.eq.s32.totalorder %s30, 0
      %p181 = por %p179, %p180
      %s183 = sadd.s32 %s182, 1
      %p186 = scmp.eq.s32.totalorder %s24, 1
      %p187 = scmp.ne.s32.totalorder %s182, %s184
      %p188 = scmp.eq.s32.totalorder %s24, 0
      %p189 = por %p187, %p188
      %p190 = scmp.ne.s32.totalorder %s182, %s184
      %p191 = scmp.eq.s32.totalorder %s29, 1
      %p192 = por %p190, %p191
      %p193 = scmp.ne.s32.totalorder %s184, %s185
      %p194 = scmp.eq.s32.totalorder %s29, 0
      %p195 = por %p193, %p194
      %p196 = scmp.ne.s32.totalorder %s184, %s185
      %p197 = scmp.eq.s32.totalorder %s30, 1
      %p198 = por %p196, %p197
      %p200 = scmp.ne.s32.totalorder %s185, %s199
      %p201 = scmp.eq.s32.totalorder %s30, 0
      %p202 = por %p200, %p201
      %s204 = sadd.s32 %s203, 1
      %p207 = scmp.eq.s32.totalorder %s24, 1
      %p208 = scmp.ne.s32.totalorder %s203, %s205
      %p209 = scmp.eq.s32.totalorder %s24, 0
      %p210 = por %p208, %p209
      %p211 = scmp.ne.s32.totalorder %s203, %s205
      %p212 = scmp.eq.s32.totalorder %s29, 1
      %p213 = por %p211, %p212
      %p214 = scmp.ne.s32.totalorder %s205, %s206
      %p215 = scmp.eq.s32.totalorder %s29, 0
      %p216 = por %p214, %p215
      %p217 = scmp.ne.s32.totalorder %s205, %s206
      %p218 = scmp.eq.s32.totalorder %s30, 1
      %p219 = por %p217, %p218
      %p221 = scmp.ne.s32.totalorder %s206, %s220
      %p222 = scmp.eq.s32.totalorder %s30, 0
      %p223 = por %p221, %p222
      %s224 = ssub.s32 %s31, %s43
      %s225 = ssub.s32 %s32, %s39
      %s226 = sor.u32 %s224, %s225
      %p227 = scmp.eq.s32.totalorder %s226, 0
      %s229 = sadd.s32 %s228, 1
      %s230 = scalar_select %p227, %s228, %s229
      %p233 = pneg %p227
      %p234 = scmp.eq.s32.totalorder %s24, 1
      %p235 = por %p233, %p234
      %p236 = scmp.ne.s32.totalorder %s228, %s231
      %p237 = scmp.eq.s32.totalorder %s24, 0
      %p238 = por %p236, %p237
      %p239 = scmp.ne.s32.totalorder %s228, %s231
      %p240 = scmp.eq.s32.totalorder %s29, 1
      %p241 = por %p239, %p240
      %p242 = scmp.ne.s32.totalorder %s231, %s232
      %p243 = scmp.eq.s32.totalorder %s29, 0
      %p244 = por %p242, %p243
      %p245 = scmp.ne.s32.totalorder %s231, %s232
      %p246 = scmp.eq.s32.totalorder %s30, 1
      %p247 = por %p245, %p246
      %p249 = scmp.ne.s32.totalorder %s232, %s248
      %p250 = scmp.eq.s32.totalorder %s30, 0
      %p251 = por %p249, %p250
      %p252 = scmp.le.s32.totalorder 1, %s24
      %p253 = scmp.lt.s32.totalorder %s24, 3
      %p254 = pnand %p252, %p253
      %p255 = pneg %p254
      // Predicated region
      $region9: #{tpu_custom_call.1} parent=5 // pred_check
        _
      $region10: #{tpu_custom_call.1} parent=5 // pred_check_branch
        %257 = sbr.rel (%p254) target = $region12
      $region11: #{tpu_custom_call.1} parent=5 // pred_region
        %s258 = ssub.s32 %s24, 1
        // Predicated region
        $region13: #{tpu_custom_call.1} parent=11 // pred_check
          %p259 = pneg %p111
        $region14: #{tpu_custom_call.1} parent=11 // pred_check_branch
          %261 = sbr.rel (%p259) target = $region16
        $region15: #{tpu_custom_call.1} parent=11 // pred_region
          %s263 = ssub.s32 512, 512
          %264 = vsyncadd [#allocation6], %s263
          %s265 = sshll.u32 [#allocation7], 4
          %s266 = int_to_ptr.vmem [resolvable:$true] %s265
          %271 = dma.hbm_to_vmem [thread:$0]  %s2, 512, %s266, [#allocation6], 128, 128, 8
        $region16: #{tpu_custom_call.1} parent=11 // pred_fallthru
          _
        // Predicated region
        $region17: #{tpu_custom_call.1} parent=11 // pred_check
          %p272 = pneg %p132
        $region18: #{tpu_custom_call.1} parent=11 // pred_check_branch
          %274 = sbr.rel (%p272) target = $region20
        $region19: #{tpu_custom_call.1} parent=11 // pred_region
          %s276 = ssub.s32 512, 512
          %277 = vsyncadd [#allocation9], %s276
          %s278 = sshll.u32 [#allocation8], 4
          %s279 = int_to_ptr.vmem [resolvable:$true] %s278
          %284 = dma.hbm_to_vmem [thread:$0]  %s3, 512, %s279, [#allocation9], 128, 128, 8
        $region20: #{tpu_custom_call.1} parent=11 // pred_fallthru
          _
        // Predicated region
        $region21: #{tpu_custom_call.1} parent=11 // pred_check
          %p285 = pneg %p153
        $region22: #{tpu_custom_call.1} parent=11 // pred_check_branch
          %287 = sbr.rel (%p285) target = $region24
        $region23: #{tpu_custom_call.1} parent=11 // pred_region
          _
        $region24: #{tpu_custom_call.1} parent=11 // pred_fallthru
          _
        // Predicated region
        $region25: #{tpu_custom_call.1} parent=11 // pred_check
          %p288 = pneg %p174
        $region26: #{tpu_custom_call.1} parent=11 // pred_check_branch
          %290 = sbr.rel (%p288) target = $region28
        $region27: #{tpu_custom_call.1} parent=11 // pred_region
          _
        $region28: #{tpu_custom_call.1} parent=11 // pred_fallthru
          _
        // Predicated region
        $region29: #{tpu_custom_call.1} parent=11 // pred_check
          %p291 = pneg %p195
        $region30: #{tpu_custom_call.1} parent=11 // pred_check_branch
          %293 = sbr.rel (%p291) target = $region32
        $region31: #{tpu_custom_call.1} parent=11 // pred_region
          %s295 = ssub.s32 512, 512
          %296 = vsyncadd [#allocation9], %s295
          %s297 = sshll.u32 [#allocation10], 4
          %s298 = int_to_ptr.vmem [resolvable:$true] %s297
          %303 = dma.hbm_to_vmem [thread:$0]  %s6, 512, %s298, [#allocation9], 128, 128, 8
        $region32: #{tpu_custom_call.1} parent=11 // pred_fallthru
          _
        // Predicated region
        $region33: #{tpu_custom_call.1} parent=11 // pred_check
          %p304 = pneg %p216
        $region34: #{tpu_custom_call.1} parent=11 // pred_check_branch
          %306 = sbr.rel (%p304) target = $region36
        $region35: #{tpu_custom_call.1} parent=11 // pred_region
          _
        $region36: #{tpu_custom_call.1} parent=11 // pred_fallthru
          _
      $region12: #{tpu_custom_call.1} parent=5 // pred_fallthru
        _
      %p307 = scmp.lt.s32.totalorder %s24, 2
      // Predicated region
      $region37: #{tpu_custom_call.1} parent=5 // pred_check
        %p308 = pneg %p307
      $region38: #{tpu_custom_call.1} parent=5 // pred_check_branch
        %310 = sbr.rel (%p308) target = $region40
      $region39: #{tpu_custom_call.1} parent=5 // pred_region
        // Predicated region
        $region41: #{tpu_custom_call.1} parent=39 // pred_check
          %p311 = pneg %p58
        $region42: #{tpu_custom_call.1} parent=39 // pred_check_branch
          %313 = sbr.rel (%p311) target = $region44
        $region43: #{tpu_custom_call.1} parent=39 // pred_region
          %s314 = sand.u32 %s48, 1
          %s315 = scalar_lea.sflag [#allocation3], %s314
          %s316 = sand.u32 %s48, 1
          %s317 = smul.addr %s316, 8
          %s318 = scalar_lea.vmem [#allocation2], %s317
          %s320 = ssub.s32 128, 128
          %321 = vsyncadd %s315, %s320
          %s322 = sadd.s32 %s32, %s31
          %s323 = smul.addr %s322, 128
          %s324 = scalar_lea.hbm %s0, %s323
          %s326 = sshll.u32 %s318, 4
          %s327 = int_to_ptr.vmem [resolvable:$true] %s326
          %329 = dma.hbm_to_vmem [thread:$0]  %s324, 128, %s327, %s315
        $region44: #{tpu_custom_call.1} parent=39 // pred_fallthru
          _
        // Predicated region
        $region45: #{tpu_custom_call.1} parent=39 // pred_check
          %p330 = pneg %p84
        $region46: #{tpu_custom_call.1} parent=39 // pred_check_branch
          %332 = sbr.rel (%p330) target = $region48
        $region47: #{tpu_custom_call.1} parent=39 // pred_region
          %s333 = sand.u32 %s24, 1
          %s334 = scalar_lea.sflag [#allocation6], %s333
          %s335 = sand.u32 %s74, 1
          %s336 = smul.addr %s335, 8
          %s337 = scalar_lea.vmem [#allocation5], %s336
          %s339 = ssub.s32 128, 128
          %340 = vsyncadd %s334, %s339
          %s341 = smul.addr %s31, 128
          %s342 = scalar_lea.hbm %s1, %s341
          %s344 = sshll.u32 %s337, 4
          %s345 = int_to_ptr.vmem [resolvable:$true] %s344
          %347 = dma.hbm_to_vmem [thread:$0]  %s342, 128, %s345, %s334
        $region48: #{tpu_custom_call.1} parent=39 // pred_fallthru
          _
      $region40: #{tpu_custom_call.1} parent=5 // pred_fallthru
        _
      %p348 = scmp.le.s32.totalorder 1, %s24
      %p349 = scmp.lt.s32.totalorder %s24, 3
      %p350 = pnand %p348, %p349
      %p351 = pneg %p350
      // Predicated region
      $region49: #{tpu_custom_call.1} parent=5 // pred_check
        _
      $region50: #{tpu_custom_call.1} parent=5 // pred_check_branch
        %353 = sbr.rel (%p350) target = $region52
      $region51: #{tpu_custom_call.1} parent=5 // pred_region
        %s354 = ssub.s32 %s24, 1
        %s355 = sand.u32 %s51, 1
        %s356 = scalar_lea.sflag [#allocation3], %s355
        %s357 = sand.u32 %s51, 1
        %s358 = smul.addr %s357, 8
        %s359 = scalar_lea.vmem [#allocation2], %s358
        // Predicated region
        $region53: #{tpu_custom_call.1} parent=51 // pred_check
          %p360 = pneg %p64
        $region54: #{tpu_custom_call.1} parent=51 // pred_check_branch
          %362 = sbr.rel (%p360) target = $region56
        $region55: #{tpu_custom_call.1} parent=51 // pred_region
          %363 = dma.done %s356, 128
        $region56: #{tpu_custom_call.1} parent=51 // pred_fallthru
          _
        %s364 = sand.u32 %s29, 1
        %s365 = scalar_lea.sflag [#allocation6], %s364
        %s366 = sand.u32 %s77, 1
        %s367 = smul.addr %s366, 8
        %s368 = scalar_lea.vmem [#allocation5], %s367
        // Predicated region
        $region57: #{tpu_custom_call.1} parent=51 // pred_check
          %p369 = pneg %p90
        $region58: #{tpu_custom_call.1} parent=51 // pred_check_branch
          %371 = sbr.rel (%p369) target = $region60
        $region59: #{tpu_custom_call.1} parent=51 // pred_region
          %372 = dma.done %s365, 128
        $region60: #{tpu_custom_call.1} parent=51 // pred_fallthru
          _
        // Predicated region
        $region61: #{tpu_custom_call.1} parent=51 // pred_check
          %p373 = pneg %p111
        $region62: #{tpu_custom_call.1} parent=51 // pred_check_branch
          %375 = sbr.rel (%p373) target = $region64
        $region63: #{tpu_custom_call.1} parent=51 // pred_region
          %376 = dma.done [#allocation6], 512
        $region64: #{tpu_custom_call.1} parent=51 // pred_fallthru
          _
        // Predicated region
        $region65: #{tpu_custom_call.1} parent=51 // pred_check
          %p377 = pneg %p132
        $region66: #{tpu_custom_call.1} parent=51 // pred_check_branch
          %379 = sbr.rel (%p377) target = $region68
        $region67: #{tpu_custom_call.1} parent=51 // pred_region
          %380 = dma.done [#allocation9], 512
        $region68: #{tpu_custom_call.1} parent=51 // pred_fallthru
          _
        // Predicated region
        $region69: #{tpu_custom_call.1} parent=51 // pred_check
          %p381 = pneg %p195
        $region70: #{tpu_custom_call.1} parent=51 // pred_check_branch
          %383 = sbr.rel (%p381) target = $region72
        $region71: #{tpu_custom_call.1} parent=51 // pred_region
          %384 = dma.done [#allocation9], 512
        $region72: #{tpu_custom_call.1} parent=51 // pred_fallthru
          _
        %s385 = sand.u32 %s51, 1
        %s386 = scalar_lea.sflag [#allocation3], %s385
        %s387 = sand.u32 %s51, 1
        %s388 = smul.addr %s387, 8
        %s389 = scalar_lea.vmem [#allocation2], %s388
        %p390 = pneg %p64
        %p391 = pneg %p61
        %s392 = sand.u32 %s29, 1
        %s393 = scalar_lea.sflag [#allocation6], %s392
        %s394 = sand.u32 %s77, 1
        %s395 = smul.addr %s394, 8
        %s396 = scalar_lea.vmem [#allocation5], %s395
        %p397 = pneg %p90
        %p398 = pneg %p87
        %p399 = pneg %p111
        %p400 = pneg %p108
        %p401 = pneg %p132
        %p402 = pneg %p129
        %p403 = pneg %p153
        %p404 = pneg %p150
        %p405 = pneg %p174
        %p406 = pneg %p171
        %p407 = pneg %p195
        %p408 = pneg %p192
        %p409 = pneg %p216
        %p410 = pneg %p213
        %p411 = pneg %p244
        %p412 = pneg %p241
        %s413 = sand.u32 %s231, 1
        %s414 = scalar_lea.sflag [#allocation4], %s413
        %s415 = sand.u32 %s231, 1
        %s416 = smul.addr %s415, 8
        %s417 = scalar_lea.vmem [#allocation11], %s416
        %v418 = vld [vmem:[%s359] sm:$0xff]
        %v419 = vld [vmem:[%s368] sm:$0xff]
        %v420 = vld [vmem:[#allocation7] sm:$0xff]
        %v421 = vld [vmem:[#allocation7 + $0x8] sm:$0xff]
        %v422 = vld [vmem:[#allocation7 + $0x10] sm:$0xff]
        %v423 = vld [vmem:[#allocation7 + $0x18] sm:$0xff]
        %v424 = vld [vmem:[%s4] sm:$0x1]
        %v426 = vlaneseq
        %v427 = vshrl.u32 %v426, 7
        %v428 = vsub.s32 0, %v427
        %v429 = vrot.slane %v424, %v428
        %vm431 = vcmask 261120
        %v433 = vsel %vm431, %v418, 0
        %435 = vmatprep.subr.mxu0 0.0
        %436 = vmatpush1.msra.mxu0 %v420
        %437 = vmatprep.subr.mxu0 0.0
        %438 = vmatpush1.msra.mxu0 %v421
        %439 = vmatprep.subr.mxu0 0.0
        %440 = vmatpush1.msra.mxu0 %v422
        %441 = vmatprep.subr.mxu0 0.0
        %442 = vmatpush1.msra.mxu0 %v423
        %443 = vmatprep.subr.mxu0 0.0
        %444 = vmatpush1.msra.mxu0 0.0
        %445 = vmatprep.subr.mxu0 0.0
        %446 = vmatpush1.msra.mxu0 0.0
        %447 = vmatprep.subr.mxu0 0.0
        %448 = vmatpush1.msra.mxu0 0.0
        %449 = vmatprep.subr.mxu0 0.0
        %450 = vmatpush1.msra.mxu0 0.0
        %451 = vmatprep.subr.mxu0 0.0
        %452 = vmatpush1.msra.mxu0 0.0
        %453 = vmatprep.subr.mxu0 0.0
        %454 = vmatpush1.msra.mxu0 0.0
        %455 = vmatprep.subr.mxu0 0.0
        %456 = vmatpush1.msra.mxu0 0.0
        %457 = vmatprep.subr.mxu0 0.0
        %458 = vmatpush1.msra.mxu0 0.0
        %459 = vmatprep.subr.mxu0 0.0
        %460 = vmatpush1.msra.mxu0 0.0
        %461 = vmatprep.subr.mxu0 0.0
        %462 = vmatpush1.msra.mxu0 0.0
        %463 = vmatprep.subr.mxu0 0.0
        %464 = vmatpush1.msra.mxu0 0.0
        %465 = vmatprep.subr.mxu0 0.0
        %466 = vmatpush1.msra.mxu0 0.0
        %467 = vmatprep.subr.mxu0 0.0
        %468 = vmatpush1.msra.mxu0 0.0
        %469 = vmatprep.subr.mxu0 0.0
        %470 = vmatpush1.msra.mxu0 0.0
        %471 = vmatprep.subr.mxu0 0.0
        %472 = vmatpush1.msra.mxu0 0.0
        %473 = vmatprep.subr.mxu0 0.0
        %474 = vmatpush1.msra.mxu0 0.0
        %475 = vmatprep.subr.mxu0 0.0
        %476 = vmatpush1.msra.mxu0 0.0
        %477 = vmatprep.subr.mxu0 0.0
        %478 = vmatpush1.msra.mxu0 0.0
        %479 = vmatprep.subr.mxu0 0.0
        %480 = vmatpush1.msra.mxu0 0.0
        %481 = vmatprep.subr.mxu0 0.0
        %482 = vmatpush1.msra.mxu0 0.0
        %483 = vmatprep.subr.mxu0 0.0
        %484 = vmatpush1.msra.mxu0 0.0
        %485 = vmatprep.subr.mxu0 0.0
        %486 = vmatpush1.msra.mxu0 0.0
        %487 = vmatprep.subr.mxu0 0.0
        %488 = vmatpush1.msra.mxu0 0.0
        %489 = vmatprep.subr.mxu0 0.0
        %490 = vmatpush1.msra.mxu0 0.0
        %491 = vmatprep.subr.mxu0 0.0
        %492 = vmatpush1.msra.mxu0 0.0
        %493 = vmatprep.subr.mxu0 0.0
        %494 = vmatpush1.msra.mxu0 0.0
        %495 = vmatprep.subr.mxu0 0.0
        %496 = vmatpush1.msra.mxu0 0.0
        %497 = vmatprep.subr.mxu0 0.0
        %498 = vmatpush1.msra.mxu0 0.0
        %499 = vmatprep.mubr.f32.mxu0 0.0
        %500 = vmatmul.mubr.f32.gmra.mrb[0].mxu0 %v433
        %v501 = vpop.f32.mrb[0].mxu0
        %v502 = vadd.f32 %v429, %v501
        %v503 = vpop.f32.mrb[0].mxu0
        %504 = vdwg.mxu0
        %v505 = vld [vmem:[#allocation8] sm:$0xff]
        %v506 = vld [vmem:[#allocation8 + $0x8] sm:$0xff]
        %v507 = vld [vmem:[#allocation8 + $0x10] sm:$0xff]
        %v508 = vld [vmem:[#allocation8 + $0x18] sm:$0xff]
        %v509 = vld [vmem:[%s5] sm:$0x1]
        %v511 = vlaneseq
        %v512 = vshrl.u32 %v511, 7
        %v513 = vsub.s32 0, %v512
        %v514 = vrot.slane %v509, %v513
        %v517 = vsel %vm431, %v419, 0
        %519 = vmatprep.subr.mxu0 0.0
        %520 = vmatpush1.msra.mxu0 %v505
        %521 = vmatprep.subr.mxu0 0.0
        %522 = vmatpush1.msra.mxu0 %v506
        %523 = vmatprep.subr.mxu0 0.0
        %524 = vmatpush1.msra.mxu0 %v507
        %525 = vmatprep.subr.mxu0 0.0
        %526 = vmatpush1.msra.mxu0 %v508
        %527 = vmatprep.subr.mxu0 0.0
        %528 = vmatpush1.msra.mxu0 0.0
        %529 = vmatprep.subr.mxu0 0.0
        %530 = vmatpush1.msra.mxu0 0.0
        %531 = vmatprep.subr.mxu0 0.0
        %532 = vmatpush1.msra.mxu0 0.0
        %533 = vmatprep.subr.mxu0 0.0
        %534 = vmatpush1.msra.mxu0 0.0
        %535 = vmatprep.subr.mxu0 0.0
        %536 = vmatpush1.msra.mxu0 0.0
        %537 = vmatprep.subr.mxu0 0.0
        %538 = vmatpush1.msra.mxu0 0.0
        %539 = vmatprep.subr.mxu0 0.0
        %540 = vmatpush1.msra.mxu0 0.0
        %541 = vmatprep.subr.mxu0 0.0
        %542 = vmatpush1.msra.mxu0 0.0
        %543 = vmatprep.subr.mxu0 0.0
        %544 = vmatpush1.msra.mxu0 0.0
        %545 = vmatprep.subr.mxu0 0.0
        %546 = vmatpush1.msra.mxu0 0.0
        %547 = vmatprep.subr.mxu0 0.0
        %548 = vmatpush1.msra.mxu0 0.0
        %549 = vmatprep.subr.mxu0 0.0
        %550 = vmatpush1.msra.mxu0 0.0
        %551 = vmatprep.subr.mxu0 0.0
        %552 = vmatpush1.msra.mxu0 0.0
        %553 = vmatprep.subr.mxu0 0.0
        %554 = vmatpush1.msra.mxu0 0.0
        %555 = vmatprep.subr.mxu0 0.0
        %556 = vmatpush1.msra.mxu0 0.0
        %557 = vmatprep.subr.mxu0 0.0
        %558 = vmatpush1.msra.mxu0 0.0
        %559 = vmatprep.subr.mxu0 0.0
        %560 = vmatpush1.msra.mxu0 0.0
        %561 = vmatprep.subr.mxu0 0.0
        %562 = vmatpush1.msra.mxu0 0.0
        %563 = vmatprep.subr.mxu0 0.0
        %564 = vmatpush1.msra.mxu0 0.0
        %565 = vmatprep.subr.mxu0 0.0
        %566 = vmatpush1.msra.mxu0 0.0
        %567 = vmatprep.subr.mxu0 0.0
        %568 = vmatpush1.msra.mxu0 0.0
        %569 = vmatprep.subr.mxu0 0.0
        %570 = vmatpush1.msra.mxu0 0.0
        %571 = vmatprep.subr.mxu0 0.0
        %572 = vmatpush1.msra.mxu0 0.0
        %573 = vmatprep.subr.mxu0 0.0
        %574 = vmatpush1.msra.mxu0 0.0
        %575 = vmatprep.subr.mxu0 0.0
        %576 = vmatpush1.msra.mxu0 0.0
        %577 = vmatprep.subr.mxu0 0.0
        %578 = vmatpush1.msra.mxu0 0.0
        %579 = vmatprep.subr.mxu0 0.0
        %580 = vmatpush1.msra.mxu0 0.0
        %581 = vmatprep.subr.mxu0 0.0
        %582 = vmatpush1.msra.mxu0 0.0
        %583 = vmatprep.mubr.f32.mxu0 0.0
        %584 = vmatmul.mubr.f32.gmra.mrb[0].mxu0 %v517
        %v585 = vpop.f32.mrb[0].mxu0
        %v586 = vadd.f32 %v514, %v585
        %v587 = vpop.f32.mrb[0].mxu0
        %588 = vdwg.mxu0
        %v589 = vmul.f32 %v502, 0.25
        %vm590 = vcmask 130048
        %v592 = vsel %vm590, %v589, 0
        %v595 = vsel %vm590, %v586, 0
        %597 = vmatprep.subr.mxu0 0.0
        %598 = vmatpush1.xpose.msra.mxu0 %v595
        %599 = vmatprep.subr.mxu0 0.0
        %600 = vmatpush1.xpose.msra.mxu0 0.0
        %601 = vmatprep.subr.mxu0 0.0
        %602 = vmatpush1.xpose.msra.mxu0 0.0
        %603 = vmatprep.subr.mxu0 0.0
        %604 = vmatpush1.xpose.msra.mxu0 0.0
        %605 = vmatprep.subr.mxu0 0.0
        %606 = vmatpush1.xpose.msra.mxu0 0.0
        %607 = vmatprep.subr.mxu0 0.0
        %608 = vmatpush1.xpose.msra.mxu0 0.0
        %609 = vmatprep.subr.mxu0 0.0
        %610 = vmatpush1.xpose.msra.mxu0 0.0
        %611 = vmatprep.subr.mxu0 0.0
        %612 = vmatpush1.xpose.msra.mxu0 0.0
        %613 = vmatprep.subr.mxu0 0.0
        %614 = vmatpush1.xpose.msra.mxu0 0.0
        %615 = vmatprep.subr.mxu0 0.0
        %616 = vmatpush1.xpose.msra.mxu0 0.0
        %617 = vmatprep.subr.mxu0 0.0
        %618 = vmatpush1.xpose.msra.mxu0 0.0
        %619 = vmatprep.subr.mxu0 0.0
        %620 = vmatpush1.xpose.msra.mxu0 0.0
        %621 = vmatprep.subr.mxu0 0.0
        %622 = vmatpush1.xpose.msra.mxu0 0.0
        %623 = vmatprep.subr.mxu0 0.0
        %624 = vmatpush1.xpose.msra.mxu0 0.0
        %625 = vmatprep.subr.mxu0 0.0
        %626 = vmatpush1.xpose.msra.mxu0 0.0
        %627 = vmatprep.subr.mxu0 0.0
        %628 = vmatpush1.xpose.msra.mxu0 0.0
        %629 = vmatprep.subr.mxu0 0.0
        %630 = vmatpush1.xpose.msra.mxu0 0.0
        %631 = vmatprep.subr.mxu0 0.0
        %632 = vmatpush1.xpose.msra.mxu0 0.0
        %633 = vmatprep.subr.mxu0 0.0
        %634 = vmatpush1.xpose.msra.mxu0 0.0
        %635 = vmatprep.subr.mxu0 0.0
        %636 = vmatpush1.xpose.msra.mxu0 0.0
        %637 = vmatprep.subr.mxu0 0.0
        %638 = vmatpush1.xpose.msra.mxu0 0.0
        %639 = vmatprep.subr.mxu0 0.0
        %640 = vmatpush1.xpose.msra.mxu0 0.0
        %641 = vmatprep.subr.mxu0 0.0
        %642 = vmatpush1.xpose.msra.mxu0 0.0
        %643 = vmatprep.subr.mxu0 0.0
        %644 = vmatpush1.xpose.msra.mxu0 0.0
        %645 = vmatprep.subr.mxu0 0.0
        %646 = vmatpush1.xpose.msra.mxu0 0.0
        %647 = vmatprep.subr.mxu0 0.0
        %648 = vmatpush1.xpose.msra.mxu0 0.0
        %649 = vmatprep.subr.mxu0 0.0
        %650 = vmatpush1.xpose.msra.mxu0 0.0
        %651 = vmatprep.subr.mxu0 0.0
        %652 = vmatpush1.xpose.msra.mxu0 0.0
        %653 = vmatprep.subr.mxu0 0.0
        %654 = vmatpush1.xpose.msra.mxu0 0.0
        %655 = vmatprep.subr.mxu0 0.0
        %656 = vmatpush1.xpose.msra.mxu0 0.0
        %657 = vmatprep.subr.mxu0 0.0
        %658 = vmatpush1.xpose.msra.mxu0 0.0
        %659 = vmatprep.subr.mxu0 0.0
        %660 = vmatpush1.xpose.msra.mxu0 0.0
        %661 = vmatprep.mubr.f32.mxu0 0.0
        %662 = vmatmul.mubr.f32.gmra.mrb[0].mxu0 %v592
        %v663 = vpop.f32.mrb[0].mxu0
        %v664 = vadd.f32 0.0, %v663
        %v665 = vpop.f32.mrb[0].mxu0
        %666 = vdwg.mxu0
        %vm667 = vcmask 64512
        %v668 = vsel %vm667, %v664, -inf
        %669 = vmax.xlane.f32.xlu0 %v668
        %v670 = vpop.xlane.xlu0 %669
        %v671 = vsub.f32 %v664, %v670
        %v672 = vmul.f32 %v671, 1.442695
        %v673 = vpow.pop %v672
        %v674 = vsel %vm667, %v673, 0.0
        %675 = vadd.xlane.f32.xlu0 %v674
        %v676 = vpop.xlane.xlu0 %675
        %v677 = vrcp.pop %v676
        %v678 = vmul.f32 %v673, %v677
        %679 = vrot.lane.b32.xlu0 %v586, 96
        %v680 = vpop.permute.xlu0 %679
        %v683 = vsel %vm667, %v678, 0
        %685 = vmatprep.subr.mxu0 0.0
        %686 = vmatpush1.msra.mxu0 %v680
        %687 = vmatprep.subr.mxu0 0.0
        %688 = vmatpush1.msra.mxu0 0.0
        %689 = vmatprep.subr.mxu0 0.0
        %690 = vmatpush1.msra.mxu0 0.0
        %691 = vmatprep.subr.mxu0 0.0
        %692 = vmatpush1.msra.mxu0 0.0
        %693 = vmatprep.subr.mxu0 0.0
        %694 = vmatpush1.msra.mxu0 0.0
        %695 = vmatprep.subr.mxu0 0.0
        %696 = vmatpush1.msra.mxu0 0.0
        %697 = vmatprep.subr.mxu0 0.0
        %698 = vmatpush1.msra.mxu0 0.0
        %699 = vmatprep.subr.mxu0 0.0
        %700 = vmatpush1.msra.mxu0 0.0
        %701 = vmatprep.subr.mxu0 0.0
        %702 = vmatpush1.msra.mxu0 0.0
        %703 = vmatprep.subr.mxu0 0.0
        %704 = vmatpush1.msra.mxu0 0.0
        %705 = vmatprep.subr.mxu0 0.0
        %706 = vmatpush1.msra.mxu0 0.0
        %707 = vmatprep.subr.mxu0 0.0
        %708 = vmatpush1.msra.mxu0 0.0
        %709 = vmatprep.subr.mxu0 0.0
        %710 = vmatpush1.msra.mxu0 0.0
        %711 = vmatprep.subr.mxu0 0.0
        %712 = vmatpush1.msra.mxu0 0.0
        %713 = vmatprep.subr.mxu0 0.0
        %714 = vmatpush1.msra.mxu0 0.0
        %715 = vmatprep.subr.mxu0 0.0
        %716 = vmatpush1.msra.mxu0 0.0
        %717 = vmatprep.subr.mxu0 0.0
        %718 = vmatpush1.msra.mxu0 0.0
        %719 = vmatprep.subr.mxu0 0.0
        %720 = vmatpush1.msra.mxu0 0.0
        %721 = vmatprep.subr.mxu0 0.0
        %722 = vmatpush1.msra.mxu0 0.0
        %723 = vmatprep.subr.mxu0 0.0
        %724 = vmatpush1.msra.mxu0 0.0
        %725 = vmatprep.subr.mxu0 0.0
        %726 = vmatpush1.msra.mxu0 0.0
        %727 = vmatprep.subr.mxu0 0.0
        %728 = vmatpush1.msra.mxu0 0.0
        %729 = vmatprep.subr.mxu0 0.0
        %730 = vmatpush1.msra.mxu0 0.0
        %731 = vmatprep.subr.mxu0 0.0
        %732 = vmatpush1.msra.mxu0 0.0
        %733 = vmatprep.subr.mxu0 0.0
        %734 = vmatpush1.msra.mxu0 0.0
        %735 = vmatprep.subr.mxu0 0.0
        %736 = vmatpush1.msra.mxu0 0.0
        %737 = vmatprep.subr.mxu0 0.0
        %738 = vmatpush1.msra.mxu0 0.0
        %739 = vmatprep.subr.mxu0 0.0
        %740 = vmatpush1.msra.mxu0 0.0
        %741 = vmatprep.subr.mxu0 0.0
        %742 = vmatpush1.msra.mxu0 0.0
        %743 = vmatprep.subr.mxu0 0.0
        %744 = vmatpush1.msra.mxu0 0.0
        %745 = vmatprep.subr.mxu0 0.0
        %746 = vmatpush1.msra.mxu0 0.0
        %747 = vmatprep.subr.mxu0 0.0
        %748 = vmatpush1.msra.mxu0 0.0
        %749 = vmatprep.mubr.f32.mxu0 0.0
        %750 = vmatmul.mubr.f32.gmra.mrb[0].mxu0 %v683
        %v751 = vpop.f32.mrb[0].mxu0
        %v752 = vadd.f32 0.0, %v751
        %v753 = vpop.f32.mrb[0].mxu0
        %754 = vdwg.mxu0
        %v755 = vld [vmem:[#allocation10] sm:$0xff]
        %v756 = vld [vmem:[#allocation10 + $0x8] sm:$0xff]
        %757 = vrot.lane.b32.xlu0 %v589, 112
        %v758 = vpop.permute.xlu0 %757
        %759 = vrot.lane.b32.xlu0 %v586, 112
        %v760 = vpop.permute.xlu0 %759
        %v761 = vsel %vm590, %v758, 0
        %v763 = vsel %vm590, %v760, 0
        %765 = vmatprep.subr.mxu0 0.0
        %766 = vmatpush1.xpose.msra.mxu0 %v763
        %767 = vmatprep.subr.mxu0 0.0
        %768 = vmatpush1.xpose.msra.mxu0 0.0
        %769 = vmatprep.subr.mxu0 0.0
        %770 = vmatpush1.xpose.msra.mxu0 0.0
        %771 = vmatprep.subr.mxu0 0.0
        %772 = vmatpush1.xpose.msra.mxu0 0.0
        %773 = vmatprep.subr.mxu0 0.0
        %774 = vmatpush1.xpose.msra.mxu0 0.0
        %775 = vmatprep.subr.mxu0 0.0
        %776 = vmatpush1.xpose.msra.mxu0 0.0
        %777 = vmatprep.subr.mxu0 0.0
        %778 = vmatpush1.xpose.msra.mxu0 0.0
        %779 = vmatprep.subr.mxu0 0.0
        %780 = vmatpush1.xpose.msra.mxu0 0.0
        %781 = vmatprep.subr.mxu0 0.0
        %782 = vmatpush1.xpose.msra.mxu0 0.0
        %783 = vmatprep.subr.mxu0 0.0
        %784 = vmatpush1.xpose.msra.mxu0 0.0
        %785 = vmatprep.subr.mxu0 0.0
        %786 = vmatpush1.xpose.msra.mxu0 0.0
        %787 = vmatprep.subr.mxu0 0.0
        %788 = vmatpush1.xpose.msra.mxu0 0.0
        %789 = vmatprep.subr.mxu0 0.0
        %790 = vmatpush1.xpose.msra.mxu0 0.0
        %791 = vmatprep.subr.mxu0 0.0
        %792 = vmatpush1.xpose.msra.mxu0 0.0
        %793 = vmatprep.subr.mxu0 0.0
        %794 = vmatpush1.xpose.msra.mxu0 0.0
        %795 = vmatprep.subr.mxu0 0.0
        %796 = vmatpush1.xpose.msra.mxu0 0.0
        %797 = vmatprep.subr.mxu0 0.0
        %798 = vmatpush1.xpose.msra.mxu0 0.0
        %799 = vmatprep.subr.mxu0 0.0
        %800 = vmatpush1.xpose.msra.mxu0 0.0
        %801 = vmatprep.subr.mxu0 0.0
        %802 = vmatpush1.xpose.msra.mxu0 0.0
        %803 = vmatprep.subr.mxu0 0.0
        %804 = vmatpush1.xpose.msra.mxu0 0.0
        %805 = vmatprep.subr.mxu0 0.0
        %806 = vmatpush1.xpose.msra.mxu0 0.0
        %807 = vmatprep.subr.mxu0 0.0
        %808 = vmatpush1.xpose.msra.mxu0 0.0
        %809 = vmatprep.subr.mxu0 0.0
        %810 = vmatpush1.xpose.msra.mxu0 0.0
        %811 = vmatprep.subr.mxu0 0.0
        %812 = vmatpush1.xpose.msra.mxu0 0.0
        %813 = vmatprep.subr.mxu0 0.0
        %814 = vmatpush1.xpose.msra.mxu0 0.0
        %815 = vmatprep.subr.mxu0 0.0
        %816 = vmatpush1.xpose.msra.mxu0 0.0
        %817 = vmatprep.subr.mxu0 0.0
        %818 = vmatpush1.xpose.msra.mxu0 0.0
        %819 = vmatprep.subr.mxu0 0.0
        %820 = vmatpush1.xpose.msra.mxu0 0.0
        %821 = vmatprep.subr.mxu0 0.0
        %822 = vmatpush1.xpose.msra.mxu0 0.0
        %823 = vmatprep.subr.mxu0 0.0
        %824 = vmatpush1.xpose.msra.mxu0 0.0
        %825 = vmatprep.subr.mxu0 0.0
        %826 = vmatpush1.xpose.msra.mxu0 0.0
        %827 = vmatprep.subr.mxu0 0.0
        %828 = vmatpush1.xpose.msra.mxu0 0.0
        %829 = vmatprep.mubr.f32.mxu0 0.0
        %830 = vmatmul.mubr.f32.gmra.mrb[0].mxu0 %v761
        %v831 = vpop.f32.mrb[0].mxu0
        %v832 = vadd.f32 0.0, %v831
        %v833 = vpop.f32.mrb[0].mxu0
        %834 = vdwg.mxu0
        %v835 = vsel %vm667, %v832, -inf
        %836 = vmax.xlane.f32.xlu0 %v835
        %v837 = vpop.xlane.xlu0 %836
        %v838 = vsub.f32 %v832, %v837
        %v839 = vmul.f32 %v838, 1.442695
        %v840 = vpow.pop %v839
        %v841 = vsel %vm667, %v840, 0.0
        %842 = vadd.xlane.f32.xlu0 %v841
        %v843 = vpop.xlane.xlu0 %842
        %v844 = vrcp.pop %v843
        %v845 = vmul.f32 %v840, %v844
        %846 = vrot.lane.b32.xlu0 %v586, 80
        %v847 = vpop.permute.xlu0 %846
        %v850 = vsel %vm667, %v845, 0
        %852 = vmatprep.subr.mxu0 0.0
        %853 = vmatpush1.msra.mxu0 %v847
        %854 = vmatprep.subr.mxu0 0.0
        %855 = vmatpush1.msra.mxu0 0.0
        %856 = vmatprep.subr.mxu0 0.0
        %857 = vmatpush1.msra.mxu0 0.0
        %858 = vmatprep.subr.mxu0 0.0
        %859 = vmatpush1.msra.mxu0 0.0
        %860 = vmatprep.subr.mxu0 0.0
        %861 = vmatpush1.msra.mxu0 0.0
        %862 = vmatprep.subr.mxu0 0.0
        %863 = vmatpush1.msra.mxu0 0.0
        %864 = vmatprep.subr.mxu0 0.0
        %865 = vmatpush1.msra.mxu0 0.0
        %866 = vmatprep.subr.mxu0 0.0
        %867 = vmatpush1.msra.mxu0 0.0
        %868 = vmatprep.subr.mxu0 0.0
        %869 = vmatpush1.msra.mxu0 0.0
        %870 = vmatprep.subr.mxu0 0.0
        %871 = vmatpush1.msra.mxu0 0.0
        %872 = vmatprep.subr.mxu0 0.0
        %873 = vmatpush1.msra.mxu0 0.0
        %874 = vmatprep.subr.mxu0 0.0
        %875 = vmatpush1.msra.mxu0 0.0
        %876 = vmatprep.subr.mxu0 0.0
        %877 = vmatpush1.msra.mxu0 0.0
        %878 = vmatprep.subr.mxu0 0.0
        %879 = vmatpush1.msra.mxu0 0.0
        %880 = vmatprep.subr.mxu0 0.0
        %881 = vmatpush1.msra.mxu0 0.0
        %882 = vmatprep.subr.mxu0 0.0
        %883 = vmatpush1.msra.mxu0 0.0
        %884 = vmatprep.subr.mxu0 0.0
        %885 = vmatpush1.msra.mxu0 0.0
        %886 = vmatprep.subr.mxu0 0.0
        %887 = vmatpush1.msra.mxu0 0.0
        %888 = vmatprep.subr.mxu0 0.0
        %889 = vmatpush1.msra.mxu0 0.0
        %890 = vmatprep.subr.mxu0 0.0
        %891 = vmatpush1.msra.mxu0 0.0
        %892 = vmatprep.subr.mxu0 0.0
        %893 = vmatpush1.msra.mxu0 0.0
        %894 = vmatprep.subr.mxu0 0.0
        %895 = vmatpush1.msra.mxu0 0.0
        %896 = vmatprep.subr.mxu0 0.0
        %897 = vmatpush1.msra.mxu0 0.0
        %898 = vmatprep.subr.mxu0 0.0
        %899 = vmatpush1.msra.mxu0 0.0
        %900 = vmatprep.subr.mxu0 0.0
        %901 = vmatpush1.msra.mxu0 0.0
        %902 = vmatprep.subr.mxu0 0.0
        %903 = vmatpush1.msra.mxu0 0.0
        %904 = vmatprep.subr.mxu0 0.0
        %905 = vmatpush1.msra.mxu0 0.0
        %906 = vmatprep.subr.mxu0 0.0
        %907 = vmatpush1.msra.mxu0 0.0
        %908 = vmatprep.subr.mxu0 0.0
        %909 = vmatpush1.msra.mxu0 0.0
        %910 = vmatprep.subr.mxu0 0.0
        %911 = vmatpush1.msra.mxu0 0.0
        %912 = vmatprep.subr.mxu0 0.0
        %913 = vmatpush1.msra.mxu0 0.0
        %914 = vmatprep.subr.mxu0 0.0
        %915 = vmatpush1.msra.mxu0 0.0
        %916 = vmatprep.mubr.f32.mxu0 0.0
        %917 = vmatmul.mubr.f32.gmra.mrb[0].mxu0 %v850
        %v918 = vpop.f32.mrb[0].mxu0
        %v919 = vadd.f32 0.0, %v918
        %v920 = vpop.f32.mrb[0].mxu0
        %921 = vdwg.mxu0
        %s922 = scalar_lea.vmem [#allocation10], 16
        %v923 = vld [vmem:[%s922] sm:$0xff]
        %v924 = vld [vmem:[%s922 + $0x8] sm:$0xff]
        %v926 = vsel %vm590, %v919, 0
        %928 = vmatprep.subr.mxu0 0.0
        %929 = vmatpush1.msra.mxu0 %v923
        %930 = vmatprep.subr.mxu0 0.0
        %931 = vmatpush1.msra.mxu0 %v924
        %932 = vmatprep.subr.mxu0 0.0
        %933 = vmatpush1.msra.mxu0 0.0
        %934 = vmatprep.subr.mxu0 0.0
        %935 = vmatpush1.msra.mxu0 0.0
        %936 = vmatprep.subr.mxu0 0.0
        %937 = vmatpush1.msra.mxu0 0.0
        %938 = vmatprep.subr.mxu0 0.0
        %939 = vmatpush1.msra.mxu0 0.0
        %940 = vmatprep.subr.mxu0 0.0
        %941 = vmatpush1.msra.mxu0 0.0
        %942 = vmatprep.subr.mxu0 0.0
        %943 = vmatpush1.msra.mxu0 0.0
        %944 = vmatprep.subr.mxu0 0.0
        %945 = vmatpush1.msra.mxu0 0.0
        %946 = vmatprep.subr.mxu0 0.0
        %947 = vmatpush1.msra.mxu0 0.0
        %948 = vmatprep.subr.mxu0 0.0
        %949 = vmatpush1.msra.mxu0 0.0
        %950 = vmatprep.subr.mxu0 0.0
        %951 = vmatpush1.msra.mxu0 0.0
        %952 = vmatprep.subr.mxu0 0.0
        %953 = vmatpush1.msra.mxu0 0.0
        %954 = vmatprep.subr.mxu0 0.0
        %955 = vmatpush1.msra.mxu0 0.0
        %956 = vmatprep.subr.mxu0 0.0
        %957 = vmatpush1.msra.mxu0 0.0
        %958 = vmatprep.subr.mxu0 0.0
        %959 = vmatpush1.msra.mxu0 0.0
        %960 = vmatprep.subr.mxu0 0.0
        %961 = vmatpush1.msra.mxu0 0.0
        %962 = vmatprep.subr.mxu0 0.0
        %963 = vmatpush1.msra.mxu0 0.0
        %964 = vmatprep.subr.mxu0 0.0
        %965 = vmatpush1.msra.mxu0 0.0
        %966 = vmatprep.subr.mxu0 0.0
        %967 = vmatpush1.msra.mxu0 0.0
        %968 = vmatprep.subr.mxu0 0.0
        %969 = vmatpush1.msra.mxu0 0.0
        %970 = vmatprep.subr.mxu0 0.0
        %971 = vmatpush1.msra.mxu0 0.0
        %972 = vmatprep.subr.mxu0 0.0
        %973 = vmatpush1.msra.mxu0 0.0
        %974 = vmatprep.subr.mxu0 0.0
        %975 = vmatpush1.msra.mxu0 0.0
        %976 = vmatprep.subr.mxu0 0.0
        %977 = vmatpush1.msra.mxu0 0.0
        %978 = vmatprep.subr.mxu0 0.0
        %979 = vmatpush1.msra.mxu0 0.0
        %980 = vmatprep.subr.mxu0 0.0
        %981 = vmatpush1.msra.mxu0 0.0
        %982 = vmatprep.subr.mxu0 0.0
        %983 = vmatpush1.msra.mxu0 0.0
        %984 = vmatprep.subr.mxu0 0.0
        %985 = vmatpush1.msra.mxu0 0.0
        %986 = vmatprep.subr.mxu0 0.0
        %987 = vmatpush1.msra.mxu0 0.0
        %988 = vmatprep.subr.mxu0 0.0
        %989 = vmatpush1.msra.mxu0 0.0
        %990 = vmatprep.subr.mxu0 0.0
        %991 = vmatpush1.msra.mxu0 0.0
        %992 = vmatprep.mubr.f32.mxu0 0.0
        %993 = vmatmul.mubr.f32.gmra.mrb[0].mxu0 %v926
        %v994 = vpop.f32.mrb[0].mxu0
        %v995 = vadd.f32 0.0, %v994
        %v996 = vpop.f32.mrb[0].mxu0
        %997 = vdwg.mxu0
        %v999 = vsel %vm590, %v752, 0
        %1001 = vmatprep.subr.mxu0 0.0
        %1002 = vmatpush1.msra.mxu0 %v755
        %1003 = vmatprep.subr.mxu0 0.0
        %1004 = vmatpush1.msra.mxu0 %v756
        %1005 = vmatprep.subr.mxu0 0.0
        %1006 = vmatpush1.msra.mxu0 0.0
        %1007 = vmatprep.subr.mxu0 0.0
        %1008 = vmatpush1.msra.mxu0 0.0
        %1009 = vmatprep.subr.mxu0 0.0
        %1010 = vmatpush1.msra.mxu0 0.0
        %1011 = vmatprep.subr.mxu0 0.0
        %1012 = vmatpush1.msra.mxu0 0.0
        %1013 = vmatprep.subr.mxu0 0.0
        %1014 = vmatpush1.msra.mxu0 0.0
        %1015 = vmatprep.subr.mxu0 0.0
        %1016 = vmatpush1.msra.mxu0 0.0
        %1017 = vmatprep.subr.mxu0 0.0
        %1018 = vmatpush1.msra.mxu0 0.0
        %1019 = vmatprep.subr.mxu0 0.0
        %1020 = vmatpush1.msra.mxu0 0.0
        %1021 = vmatprep.subr.mxu0 0.0
        %1022 = vmatpush1.msra.mxu0 0.0
        %1023 = vmatprep.subr.mxu0 0.0
        %1024 = vmatpush1.msra.mxu0 0.0
        %1025 = vmatprep.subr.mxu0 0.0
        %1026 = vmatpush1.msra.mxu0 0.0
        %1027 = vmatprep.subr.mxu0 0.0
        %1028 = vmatpush1.msra.mxu0 0.0
        %1029 = vmatprep.subr.mxu0 0.0
        %1030 = vmatpush1.msra.mxu0 0.0
        %1031 = vmatprep.subr.mxu0 0.0
        %1032 = vmatpush1.msra.mxu0 0.0
        %1033 = vmatprep.subr.mxu0 0.0
        %1034 = vmatpush1.msra.mxu0 0.0
        %1035 = vmatprep.subr.mxu0 0.0
        %1036 = vmatpush1.msra.mxu0 0.0
        %1037 = vmatprep.subr.mxu0 0.0
        %1038 = vmatpush1.msra.mxu0 0.0
        %1039 = vmatprep.subr.mxu0 0.0
        %1040 = vmatpush1.msra.mxu0 0.0
        %1041 = vmatprep.subr.mxu0 0.0
        %1042 = vmatpush1.msra.mxu0 0.0
        %1043 = vmatprep.subr.mxu0 0.0
        %1044 = vmatpush1.msra.mxu0 0.0
        %1045 = vmatprep.subr.mxu0 0.0
        %1046 = vmatpush1.msra.mxu0 0.0
        %1047 = vmatprep.subr.mxu0 0.0
        %1048 = vmatpush1.msra.mxu0 0.0
        %1049 = vmatprep.subr.mxu0 0.0
        %1050 = vmatpush1.msra.mxu0 0.0
        %1051 = vmatprep.subr.mxu0 0.0
        %1052 = vmatpush1.msra.mxu0 0.0
        %1053 = vmatprep.subr.mxu0 0.0
        %1054 = vmatpush1.msra.mxu0 0.0
        %1055 = vmatprep.subr.mxu0 0.0
        %1056 = vmatpush1.msra.mxu0 0.0
        %1057 = vmatprep.subr.mxu0 0.0
        %1058 = vmatpush1.msra.mxu0 0.0
        %1059 = vmatprep.subr.mxu0 0.0
        %1060 = vmatpush1.msra.mxu0 0.0
        %1061 = vmatprep.subr.mxu0 0.0
        %1062 = vmatpush1.msra.mxu0 0.0
        %1063 = vmatprep.subr.mxu0 0.0
        %1064 = vmatpush1.msra.mxu0 0.0
        %1065 = vmatprep.mubr.f32.mxu0 0.0
        %1066 = vmatmul.mubr.f32.gmra.mrb[0].mxu0 %v999
        %v1067 = vpop.f32.mrb[0].mxu0
        %v1068 = vadd.f32 %v995, %v1067
        %v1069 = vpop.f32.mrb[0].mxu0
        %1070 = vdwg.mxu0
        %v1071 = vld [vmem:[%s7] sm:$0x1]
        %v1073 = vlaneseq
        %v1074 = vshrl.u32 %v1073, 7
        %v1075 = vsub.s32 0, %v1074
        %v1076 = vrot.slane %v1071, %v1075
        %v1078 = vadd.f32 %v1068, %v1076
        %1079 = vst [vmem:[%s417] sm:$0xff] %v1078
        %s1080 = sand.u32 %s231, 1
        %s1081 = scalar_lea.sflag [#allocation4], %s1080
        %s1082 = sand.u32 %s231, 1
        %s1083 = smul.addr %s1082, 8
        %s1084 = scalar_lea.vmem [#allocation11], %s1083
        // Predicated region
        $region73: #{tpu_custom_call.1} parent=51 // pred_check
          %p1085 = pneg %p241
        $region74: #{tpu_custom_call.1} parent=51 // pred_check_branch
          %1087 = sbr.rel (%p1085) target = $region76
        $region75: #{tpu_custom_call.1} parent=51 // pred_region
          %s1089 = ssub.s32 128, 128
          %1090 = vsyncadd %s1081, %s1089
          %s1091 = sadd.s32 %s34, %s33
          %s1092 = smul.addr %s1091, 128
          %s1093 = scalar_lea.hbm %s8, %s1092
          %s1095 = sshll.u32 %s1084, 4
          %s1096 = int_to_ptr.vmem [resolvable:$true] %s1095
          %1098 = dma.vmem_to_hbm [thread:$0]  %s1096, 128, %s1093, %s1081
        $region76: #{tpu_custom_call.1} parent=51 // pred_fallthru
          _
      $region52: #{tpu_custom_call.1} parent=5 // pred_fallthru
        _
      %p1099 = scmp.le.s32.totalorder 2, %s24
      // Predicated region
      $region77: #{tpu_custom_call.1} parent=5 // pred_check
        %p1100 = pneg %p1099
      $region78: #{tpu_custom_call.1} parent=5 // pred_check_branch
        %1102 = sbr.rel (%p1100) target = $region80
      $region79: #{tpu_custom_call.1} parent=5 // pred_region
        %s1103 = ssub.s32 %s24, 2
        // Predicated region
        $region81: #{tpu_custom_call.1} parent=79 // pred_check
          %p1104 = pneg %p247
        $region82: #{tpu_custom_call.1} parent=79 // pred_check_branch
          %1106 = sbr.rel (%p1104) target = $region84
        $region83: #{tpu_custom_call.1} parent=79 // pred_region
          %s1107 = sand.u32 %s232, 1
          %s1108 = scalar_lea.sflag [#allocation4], %s1107
          %s1109 = sand.u32 %s232, 1
          %s1110 = smul.addr %s1109, 8
          %s1111 = scalar_lea.vmem [#allocation11], %s1110
          %1112 = dma.done %s1108, 128
        $region84: #{tpu_custom_call.1} parent=79 // pred_fallthru
          _
      $region80: #{tpu_custom_call.1} parent=5 // pred_fallthru
        _
    $region6: #{tpu_custom_call.1} parent=1 // loop_footer
      %s28 = sadd.s32 1, %s24
    $region7: #{tpu_custom_call.1} parent=1 // loop_footer_branch
      %23 = sbr.rel target = $region3
    $region8: #{tpu_custom_call.1} parent=1 // loop_exit
      _
    %1113 = vsyncpa [#allocation3], 1
    %s1114 = scalar_lea.sflag [#allocation3], 1
    %1115 = vsyncpa %s1114, 1
    %1116 = vsyncpa [#allocation6], 1
    %s1117 = scalar_lea.sflag [#allocation6], 1
    %1118 = vsyncpa %s1117, 1
    %1119 = vsyncpa [#allocation9], 1
    %1120 = vsyncpa [#allocation4], 1
    %s1121 = scalar_lea.sflag [#allocation4], 1
    %1122 = vsyncpa %s1121, 1

</llo_original>
